<compile_context>
chip_gen: v7x
topology: tpu7x:2x2x1
jax: 0.10.0
libtpu: 0.0.40
codegen_flags: <defaults>
</compile_context>

<pallas_src>
import math

import jax
import jax.numpy as jnp
from jax import lax
from jax.experimental import pallas as pl
from jax.experimental.pallas import tpu as pltpu

_LANES = 128


def _make_geometric_kernel(f, r, needs_mask):
    """Builds a kernel processing a (tb, r, 128) block = tb whole samples."""

    def kernel(x_ref, o_ref):
        x = x_ref[...].astype(jnp.float32)               # (tb, r, 128)

        if needs_mask:
            # Mask out the lane-padding elements (flat index >= f).
            flat_idx = (
                lax.broadcasted_iota(jnp.int32, (r, _LANES), 0) * _LANES
                + lax.broadcasted_iota(jnp.int32, (r, _LANES), 1)
            )
            valid = (flat_idx < f)[None, :, :]            # (1, r, 128)
            x_for_min = jnp.where(valid, x, jnp.inf)
            x_for_max = jnp.where(valid, x, -jnp.inf)
        else:
            x_for_min = x
            x_for_max = x

        # Per-sample min / max (lane reduce then sublane reduce -> XLU).
        mn = jnp.min(jnp.min(x_for_min, axis=2, keepdims=True),
                     axis=1, keepdims=True)               # (tb, 1, 1)
        mx = jnp.max(jnp.max(x_for_max, axis=2, keepdims=True),
                     axis=1, keepdims=True)               # (tb, 1, 1)

        d = x - mn
        sq = d * d
        if needs_mask:
            sq = jnp.where(valid, sq, jnp.float32(0.0))
        s = jnp.sum(jnp.sum(sq, axis=2, keepdims=True),
                    axis=1, keepdims=True)                # (tb, 1, 1)

        rng = mx - mn
        det = (s / (rng * rng))[:, 0, :]                  # (tb, 1) one divide/sample

        # Lane-dense store; wrapper reads lane 0 of each row.
        o_ref[...] = jnp.broadcast_to(det, o_ref.shape).astype(o_ref.dtype)

    return kernel


def geometric_loss(x):
    """x: (B, ...) array -> scalar float32.

    For each batch element: flatten, min-max normalize, squared L2 norm;
    return the mean over the batch (matches the PyTorch `Geometric` module).
    """
    b = x.shape[0]
    f = math.prod(x.shape[1:])

    # Pad the flattened feature dim to a multiple of 128 lanes.
    f_pad = -(-f // _LANES) * _LANES
    r = f_pad // _LANES
    needs_mask = f_pad != f

    x2 = x.reshape(b, f).astype(jnp.float32)
    if needs_mask:
        x2 = jnp.pad(x2, ((0, 0), (0, f_pad - f)))

    # Samples per grid step: whole batch if it fits in a small VMEM budget,
    # otherwise a multiple-of-8 chunk of samples (keeps block >= ~0.5-4 MiB).
    bytes_per_sample = f_pad * 4
    budget = 4 * 1024 * 1024
    if b * bytes_per_sample <= budget:
        tb = b
        b_pad = b
    else:
        tb = max(8, (budget // bytes_per_sample) // 8 * 8)
        b_pad = -(-b // tb) * tb
        if b_pad != b:
            # Dummy rows produce NaN (0/0) but are sliced off before the mean.
            x2 = jnp.pad(x2, ((0, b_pad - b), (0, 0)))

    x3 = x2.reshape(b_pad, r, _LANES)
    grid = (b_pad // tb,)

    out = pl.pallas_call(
        _make_geometric_kernel(f, r, needs_mask),
        out_shape=jax.ShapeDtypeStruct((b_pad, _LANES), jnp.float32),
        grid_spec=pltpu.PrefetchScalarGridSpec(
            num_scalar_prefetch=0,
            grid=grid,
            in_specs=[pl.BlockSpec((tb, r, _LANES), lambda i: (i, 0, 0))],
            out_specs=pl.BlockSpec((tb, _LANES), lambda i: (i, 0)),
        ),
        compiler_params=pltpu.CompilerParams(
            # Each grid step writes its own output rows -> fully parallel
            # (sharded across TensorCores on v7x; no-op on v5e/v6e).
            dimension_semantics=("parallel",),
        ),
    )(x3)

    per_sample = out[:b, 0]
    return jnp.mean(per_sample)


def _reference(x):
    """Pure-JAX reference mirroring the PyTorch forward exactly."""
    b = x.shape[0]
    v = x.reshape(b, -1).astype(jnp.float32)
    mn = jnp.min(v, axis=1, keepdims=True)
    mx = jnp.max(v, axis=1, keepdims=True)
    nrm = (v - mn) / (mx - mn)
    return jnp.mean(jnp.sum(nrm * nrm, axis=1))


if __name__ == "__main__":
    key = jax.random.PRNGKey(0)
    x = jax.random.normal(key, (2, 4, 16, 16), dtype=jnp.float32)

    out = jax.block_until_ready(geometric_loss(x))
    ref = jax.block_until_ready(_reference(x))

    assert jnp.allclose(out, ref, rtol=1e-4, atol=1e-5), (out, ref)

    print("KERNEL_OK")
</pallas_src>

<mosaic_0001>
module attributes {stable_mosaic.version = 11 : i64} {
  func.func @kernel(%arg0: i32, %arg1: memref<2x8x128xf32, #tpu.memory_space<vmem>>, %arg2: memref<2x128xf32, #tpu.memory_space<vmem>>) attributes {dimension_semantics = [#tpu.dimension_semantics<parallel>], iteration_bounds = array<i64: 1>, scalar_prefetch = 0 : i64, scratch_operands = 0 : i64, tpu.core_type = #tpu.core_type<tc>, window_params = [{transform_indices = @transform_0, window_bounds = array<i64: 2, 8, 128>}, {transform_indices = @transform_1, window_bounds = array<i64: 2, 128>}]} {
    %c0 = arith.constant 0 : index
    %c0_0 = arith.constant 0 : index
    %c0_1 = arith.constant 0 : index
    %0 = vector.load %arg1[%c0, %c0_0, %c0_1] : memref<2x8x128xf32, #tpu.memory_space<vmem>>, vector<2x8x128xf32>
    %cst = arith.constant dense<0x7F800000> : vector<2x8xf32>
    %1 = vector.multi_reduction <minimumf>, %0, %cst [2] : vector<2x8x128xf32> to vector<2x8xf32>
    %2 = vector.shape_cast %1 : vector<2x8xf32> to vector<2x8x1xf32>
    %cst_2 = arith.constant dense<0x7F800000> : vector<2x1xf32>
    %3 = vector.multi_reduction <minimumf>, %2, %cst_2 [1] : vector<2x8x1xf32> to vector<2x1xf32>
    %4 = vector.shape_cast %3 : vector<2x1xf32> to vector<2x1x1xf32>
    %cst_3 = arith.constant dense<0xFF800000> : vector<2x8xf32>
    %5 = vector.multi_reduction <maximumf>, %0, %cst_3 [2] : vector<2x8x128xf32> to vector<2x8xf32>
    %6 = vector.shape_cast %5 : vector<2x8xf32> to vector<2x8x1xf32>
    %cst_4 = arith.constant dense<0xFF800000> : vector<2x1xf32>
    %7 = vector.multi_reduction <maximumf>, %6, %cst_4 [1] : vector<2x8x1xf32> to vector<2x1xf32>
    %8 = vector.shape_cast %7 : vector<2x1xf32> to vector<2x1x1xf32>
    %9 = vector.broadcast %4 : vector<2x1x1xf32> to vector<2x8x128xf32>
    %10 = arith.subf %0, %9 : vector<2x8x128xf32>
    %11 = arith.mulf %10, %10 : vector<2x8x128xf32>
    %cst_5 = arith.constant dense<0.000000e+00> : vector<2x8xf32>
    %12 = vector.multi_reduction <add>, %11, %cst_5 [2] : vector<2x8x128xf32> to vector<2x8xf32>
    %13 = vector.shape_cast %12 : vector<2x8xf32> to vector<2x8x1xf32>
    %cst_6 = arith.constant dense<0.000000e+00> : vector<2x1xf32>
    %14 = vector.multi_reduction <add>, %13, %cst_6 [1] : vector<2x8x1xf32> to vector<2x1xf32>
    %15 = vector.shape_cast %14 : vector<2x1xf32> to vector<2x1x1xf32>
    %16 = arith.subf %8, %4 : vector<2x1x1xf32>
    %17 = arith.mulf %16, %16 : vector<2x1x1xf32>
    %18 = arith.divf %15, %17 : vector<2x1x1xf32>
    %19 = vector.shape_cast %18 : vector<2x1x1xf32> to vector<2x1xf32>
    %20 = vector.shape_cast %19 : vector<2x1xf32> to vector<2x1xf32>
    %21 = vector.broadcast %20 : vector<2x1xf32> to vector<2x128xf32>
    %c0_7 = arith.constant 0 : index
    %c0_8 = arith.constant 0 : index
    %22 = vector.load %arg2[%c0_7, %c0_8] : memref<2x128xf32, #tpu.memory_space<vmem>>, vector<2x128xf32>
    tpu.vector_store %arg2[%c0_7, %c0_8], %21 {strides = array<i32>} : memref<2x128xf32, #tpu.memory_space<vmem>>, vector<2x128xf32>,
    return
  }
  func.func @transform_0(%arg0: i32) -> (i32, i32, i32) {
    %c0_i32 = arith.constant 0 : i32
    %c0_i32_0 = arith.constant 0 : i32
    %c0_i32_1 = arith.constant 0 : i32
    return %arg0, %c0_i32, %c0_i32_0 : i32, i32, i32
  }
  func.func @transform_1(%arg0: i32) -> (i32, i32) {
    %c0_i32 = arith.constant 0 : i32
    %c0_i32_0 = arith.constant 0 : i32
    return %arg0, %c0_i32 : i32, i32
  }
}

</mosaic_0001>

<llo_original>
// kernel: tpu_custom_call.1
$region0: #{tpu_custom_call.1}
  #allocation0 [shape = 'u32[]', space=smem, size = 0x4, offset = 0x4, fixed_abs, tag = 'smem constant byte address 0x4 - core index']
  #allocation1 [shape = 'u32[144,128]{1,0:T(1,128)}', space=vmem, size = 0x12000, scoped, tag = 'internal scratch']
  %s0 = inlined_call_operand.hbm [shape: f32[2,8,128], index: 0, kind: input, shape index: {}]
  %s1 = inlined_call_operand.hbm [shape: f32[2,128], index: 1, kind: output, shape index: {}]
  %s2 = sld [smem:[#allocation0]]
  $region18: #{tpu_custom_call.1} parent=0
    _
  %s4 = ssub.s32 1, %s2
  %s5 = scalar_select 0, %s4, %s2
  $region1: #{tpu_custom_call.1} parent=0
    #allocation2 [shape = 'u8[8192]{0}', space=vmem, size = 0x2000, scoped, tag = 'input window, operand 0, single buffered']
    #allocation3 [shape = 's32[1]{0}', space=sflag, size = 0x4, scoped, tag = 'scoped memory for tpu_custom_call.1']
    #allocation4 [shape = 's32[1]{0}', space=sflag, size = 0x4, scoped, tag = 'scoped memory for tpu_custom_call.1']
    #allocation5 [shape = 'u8[1024]{0}', space=vmem, size = 0x400, scoped, tag = 'output window, operand 0, single buffered']
    %6 = vsyncpa [#allocation3], 0
    %7 = vsyncpa [#allocation4], 0
    // Predicated region
    $region2: #{tpu_custom_call.1} parent=1 // pred_check
      _
    $region3: #{tpu_custom_call.1} parent=1 // pred_check_branch
      %9 = sbr.rel (0) target = $region5
    $region4: #{tpu_custom_call.1} parent=1 // pred_region
      %s11 = ssub.s32 256, 256
      %12 = vsyncadd [#allocation3], %s11
      %s13 = sshll.u32 [#allocation2], 4
      %s14 = int_to_ptr.vmem [resolvable:$true] %s13
      %19 = dma.hbm_to_vmem [thread:$0]  %s0, 256, %s14, [#allocation3], 128, 128, 8
    $region5: #{tpu_custom_call.1} parent=1 // pred_fallthru
      _
    // Predicated region
    $region6: #{tpu_custom_call.1} parent=1 // pred_check
      _
    $region7: #{tpu_custom_call.1} parent=1 // pred_check_branch
      %21 = sbr.rel (0) target = $region9
    $region8: #{tpu_custom_call.1} parent=1 // pred_region
      %22 = dma.done [#allocation3], 256
    $region9: #{tpu_custom_call.1} parent=1 // pred_fallthru
      _
    %v23 = vld [vmem:[#allocation2] sm:$0xff]
    %v24 = vld [vmem:[#allocation2 + $0x8] sm:$0xff]
    %25 = vmin.xlane.f32.xlu0 %v23
    %v26 = vpop.xlane.xlu0 %25
    %27 = vmin.xlane.f32.xlu0 %v24
    %v28 = vpop.xlane.xlu0 %27
    %v29 = vrot.slane %v26, 4
    %v30 = vmin.f32 %v26, %v29
    %v31 = vrot.slane %v30, 2
    %v32 = vmin.f32 %v30, %v31
    %v33 = vrot.slane %v32, 1
    %v34 = vmin.f32 %v32, %v33
    %v35 = vrot.slane %v28, 4
    %v36 = vmin.f32 %v28, %v35
    %v37 = vrot.slane %v36, 2
    %v38 = vmin.f32 %v36, %v37
    %v39 = vrot.slane %v38, 1
    %v40 = vmin.f32 %v38, %v39
    %41 = vmax.xlane.f32.xlu0 %v23
    %v42 = vpop.xlane.xlu0 %41
    %43 = vmax.xlane.f32.xlu0 %v24
    %v44 = vpop.xlane.xlu0 %43
    %v45 = vrot.slane %v42, 4
    %v46 = vmax.f32 %v42, %v45
    %v47 = vrot.slane %v46, 2
    %v48 = vmax.f32 %v46, %v47
    %v49 = vrot.slane %v48, 1
    %v50 = vmax.f32 %v48, %v49
    %v51 = vrot.slane %v44, 4
    %v52 = vmax.f32 %v44, %v51
    %v53 = vrot.slane %v52, 2
    %v54 = vmax.f32 %v52, %v53
    %v55 = vrot.slane %v54, 1
    %v56 = vmax.f32 %v54, %v55
    %v57 = vsub.f32 %v23, %v34
    %v58 = vsub.f32 %v24, %v40
    %v59 = vmul.f32 %v57, %v57
    %v60 = vmul.f32 %v58, %v58
    %61 = vadd.xlane.f32.xlu0 %v59
    %v62 = vpop.xlane.xlu0 %61
    %63 = vadd.xlane.f32.xlu0 %v60
    %v64 = vpop.xlane.xlu0 %63
    %v65 = vrot.slane %v62, 4
    %v66 = vadd.f32 %v62, %v65
    %v67 = vrot.slane %v66, 2
    %v68 = vadd.f32 %v66, %v67
    %v69 = vrot.slane %v68, 1
    %v70 = vadd.f32 %v68, %v69
    %v71 = vrot.slane %v64, 4
    %v72 = vadd.f32 %v64, %v71
    %v73 = vrot.slane %v72, 2
    %v74 = vadd.f32 %v72, %v73
    %v75 = vrot.slane %v74, 1
    %v76 = vadd.f32 %v74, %v75
    %v77 = vsub.f32 %v50, %v34
    %v78 = vsub.f32 %v56, %v40
    %v79 = vmul.f32 %v77, %v77
    %v80 = vmul.f32 %v78, %v78
    %v81 = vrcp.pop %v79
    %v82 = vmul.f32 %v70, %v81
    %v83 = vrcp.pop %v80
    %v84 = vmul.f32 %v76, %v83
    %vm87 = vcmask 1041409
    %v88 = vsel %vm87, %v84, %v82
    %90 = vst [vmem:[#allocation5] sm:$0x3] %v88
    // Predicated region
    $region10: #{tpu_custom_call.1} parent=1 // pred_check
      _
    $region11: #{tpu_custom_call.1} parent=1 // pred_check_branch
      %92 = sbr.rel (0) target = $region13
    $region12: #{tpu_custom_call.1} parent=1 // pred_region
      %s94 = ssub.s32 32, 32
      %95 = vsyncadd [#allocation4], %s94
      %s97 = sshll.u32 [#allocation5], 4
      %s98 = int_to_ptr.vmem [resolvable:$true] %s97
      %100 = dma.vmem_to_hbm [thread:$0]  %s98, 32, %s1, [#allocation4]
    $region13: #{tpu_custom_call.1} parent=1 // pred_fallthru
      _
    // Predicated region
    $region14: #{tpu_custom_call.1} parent=1 // pred_check
      _
    $region15: #{tpu_custom_call.1} parent=1 // pred_check_branch
      %102 = sbr.rel (0) target = $region17
    $region16: #{tpu_custom_call.1} parent=1 // pred_region
      %103 = dma.done [#allocation4], 32
    $region17: #{tpu_custom_call.1} parent=1 // pred_fallthru
      _
    %104 = vsyncpa [#allocation3], 1
    %105 = vsyncpa [#allocation4], 1

</llo_original>
